<compile_context>
chip_gen: v7x
topology: tpu7x:2x2x1
jax: 0.10.0
libtpu: 0.0.40
codegen_flags: <defaults>
</compile_context>

<pallas_src>
import jax
import jax.numpy as jnp
from jax import lax
from jax.experimental import pallas as pl
from jax.experimental.pallas import tpu as pltpu


LANES = 128
SUBLANES = 8
CHUNK_ROWS = 256                       # inner strip: 256x128 f32 = 128 KiB
TARGET_BLOCK_BYTES = 4 * 1024 * 1024   # ~4 MiB native-dtype DMA per grid step
_FAST_PATH_MAX_ELEMS = 1 << 20         # below ~1M elems plain XLA reduction wins


def _make_sumsq_kernel(rows, block_rows, chunk_rows, tiles_per_split, needs_mask):
    """Build the per-grid-step kernel (all sizes are Python ints baked in)."""
    num_chunks = block_rows // chunk_rows

    def kernel(z_ref, out_ref):
        c = pl.program_id(0)     # core split axis ("parallel")
        i = pl.program_id(1)     # tile loop axis  ("arbitrary")

        @pl.when(i == 0)
        def _():
            out_ref[...] = jnp.zeros_like(out_ref)

        t = c * tiles_per_split + i        # global tile index
        tile_base = t * block_rows         # first logical row of this tile

        def chunk_sum(j, acc, masked):
            r0 = pl.multiple_of(j * chunk_rows, chunk_rows)
            chunk = z_ref[pl.ds(r0, chunk_rows), :].astype(jnp.float32)
            if masked:
                row = (tile_base + r0
                       + lax.broadcasted_iota(jnp.int32, (chunk_rows, LANES), 0))
                chunk = jnp.where(row < rows, chunk, 0.0)
            sq = chunk * chunk
            # Sublane/lane-preserving partial reduce: pure VPU adds, no XLU.
            return acc + jnp.sum(
                sq.reshape(chunk_rows // SUBLANES, SUBLANES, LANES), axis=0)

        zero_acc = jnp.zeros((SUBLANES, LANES), jnp.float32)

        if not needs_mask:
            # Every tile is fully valid: single unmasked accumulation path.
            acc = lax.fori_loop(0, num_chunks,
                                lambda j, a: chunk_sum(j, a, False), zero_acc)
            out_ref[...] += acc
        else:
            full = tile_base + block_rows <= rows

            @pl.when(full)
            def _():
                acc = lax.fori_loop(0, num_chunks,
                                    lambda j, a: chunk_sum(j, a, False), zero_acc)
                out_ref[...] += acc

            @pl.when(jnp.logical_not(full))
            def _():
                # Ragged last tile / odd-split overshoot tile: mask invalid rows.
                acc = lax.fori_loop(0, num_chunks,
                                    lambda j, a: chunk_sum(j, a, True), zero_acc)
                out_ref[...] += acc

    return kernel


def _sum_of_squares_pallas(z2d, rows, block_rows, chunk_rows):
    """sum(z2d**2) for z2d of shape (rows, 128) (rows need not divide block_rows)."""
    total_tiles = pl.cdiv(rows, block_rows)
    nsplit = 2 if total_tiles >= 2 else 1          # shard tiles over 2 TCs (v7x)
    tiles_per_split = pl.cdiv(total_tiles, nsplit)
    last_block = total_tiles - 1
    needs_mask = (rows % block_rows != 0) or (nsplit * tiles_per_split != total_tiles)
    itemsize = z2d.dtype.itemsize

    kernel = _make_sumsq_kernel(rows, block_rows, chunk_rows,
                                tiles_per_split, needs_mask)

    partials = pl.pallas_call(
        kernel,
        out_shape=jax.ShapeDtypeStruct((nsplit * SUBLANES, LANES), jnp.float32),
        grid_spec=pltpu.PrefetchScalarGridSpec(
            num_scalar_prefetch=0,
            grid=(nsplit, tiles_per_split),
            in_specs=[
                pl.BlockSpec(
                    (block_rows, LANES),
                    # Clamp so the odd-split overshoot tile re-reads a valid block;
                    # its contribution is masked to zero in-kernel.
                    lambda c, i: (jnp.minimum(c * tiles_per_split + i, last_block), 0),
                )
            ],
            out_specs=pl.BlockSpec((SUBLANES, LANES), lambda c, i: (c, 0)),
        ),
        compiler_params=pltpu.CompilerParams(
            dimension_semantics=("parallel", "arbitrary"),
        ),
        cost_estimate=pl.CostEstimate(
            flops=2 * rows * LANES,
            transcendentals=0,
            bytes_accessed=rows * LANES * itemsize,
        ),
    )(z2d)
    # Final tiny (nsplit*8, 128) cross-lane reduce done once, outside the kernel.
    return jnp.sum(partials, dtype=jnp.float32)


def _sum_of_squares(z, *, min_pallas_elems=_FAST_PATH_MAX_ELEMS):
    """Full reduction sum(z**2) over all elements of z (accumulated in f32)."""
    n = z.size
    if n == 0:
        return jnp.float32(0.0)

    flat = jnp.ravel(z)               # no dtype cast, no pad — one HBM read pass
    rows = n // LANES

    # Small-input fast path: pallas launch/pipeline overhead dwarfs the reduction.
    if rows < SUBLANES or n < min_pallas_elems:
        f = flat.astype(jnp.float32)
        return jnp.sum(f * f)

    # Dtype-scaled block size: ~4 MiB of native-dtype data per grid step.
    itemsize = flat.dtype.itemsize
    max_rows = max(TARGET_BLOCK_BYTES // (LANES * itemsize), CHUNK_ROWS)
    max_rows = (max_rows // CHUNK_ROWS) * CHUNK_ROWS

    if rows >= CHUNK_ROWS:
        block_rows = min(max_rows, (rows // CHUNK_ROWS) * CHUNK_ROWS)
        chunk_rows = CHUNK_ROWS
    else:
        block_rows = (rows // SUBLANES) * SUBLANES
        chunk_rows = block_rows

    main_elems = rows * LANES
    main = flat if main_elems == n else flat[:main_elems]
    total = _sum_of_squares_pallas(main.reshape(rows, LANES),
                                   rows, block_rows, chunk_rows)

    if main_elems != n:
        # <128-element lane remainder: fuses into the final-combine XLA op.
        lane_tail = flat[main_elems:].astype(jnp.float32)
        total = total + jnp.sum(lane_tail * lane_tail)
    return total


def glow_loss(z, logdet, *, min_pallas_elems=_FAST_PATH_MAX_ELEMS):
    """nll = -(log_prior + logdet) with log_prior = -sum(z**2)/2."""
    sum_sq = _sum_of_squares(z, min_pallas_elems=min_pallas_elems)
    log_prior = -sum_sq / 2.0
    nll = -(log_prior + jnp.asarray(logdet, dtype=jnp.float32))
    return nll


def _ref_loss(z, logdet):
    return -(-(jnp.sum(z.astype(jnp.float32) ** 2) / 2.0)
             + jnp.asarray(logdet, dtype=jnp.float32))


if __name__ == "__main__":
    key = jax.random.PRNGKey(0)
    kz, kl, kz2, kz3 = jax.random.split(key, 4)

    logdet = jax.random.normal(kl, (), dtype=jnp.float32)

    # 1) Small module-consistent NCHW shape; force the Pallas path (grid (1,1)).
    z = jax.random.normal(kz, (2, 4, 16, 16), dtype=jnp.float32)
    nll = jax.block_until_ready(glow_loss(z, logdet, min_pallas_elems=0))
    assert jnp.allclose(nll, _ref_loss(z, logdet), rtol=1e-5, atol=1e-5), nll

    # 2) Non-128-aligned shape: ragged masked tile + 2-core split + JAX lane tail.
    z2 = jax.random.normal(kz2, (2, 12, 37, 53), dtype=jnp.float32)
    nll2 = jax.block_until_ready(glow_loss(z2, logdet, min_pallas_elems=0))
    assert jnp.allclose(nll2, _ref_loss(z2, logdet), rtol=1e-5, atol=1e-5), nll2

    # 3) Larger tensor (default threshold path): full 4 MiB blocks, odd tile count
    #    exercising the clamped/masked overshoot tile on the 2-way core split.
    z3 = jax.random.normal(kz3, (8, 6, 256, 256), dtype=jnp.float32)
    nll3 = jax.block_until_ready(glow_loss(z3, logdet))
    assert jnp.allclose(nll3, _ref_loss(z3, logdet), rtol=1e-4, atol=1e-3), nll3

    # 4) bf16 input, small: native-dtype DMA, cast to f32 inside the kernel.
    zb = z.astype(jnp.bfloat16)
    nllb = jax.block_until_ready(glow_loss(zb, logdet, min_pallas_elems=0))
    assert jnp.allclose(nllb, _ref_loss(zb, logdet), rtol=1e-4, atol=1e-4), nllb

    # 5) bf16 input, large: dtype-scaled 16384-row (4 MiB) blocks + ragged tile.
    zb3 = z3.astype(jnp.bfloat16)
    nllb3 = jax.block_until_ready(glow_loss(zb3, logdet))
    assert jnp.allclose(nllb3, _ref_loss(zb3, logdet), rtol=1e-4, atol=1e-3), nllb3

    print("KERNEL_OK")
</pallas_src>

<mosaic_0001>
module attributes {stable_mosaic.version = 11 : i64} {
  func.func @kernel(%arg0: i32, %arg1: i32, %arg2: memref<16x128xf32, #tpu.memory_space<vmem>>, %arg3: memref<8x128xf32, #tpu.memory_space<vmem>>) attributes {dimension_semantics = [#tpu.dimension_semantics<parallel>, #tpu.dimension_semantics<arbitrary>], iteration_bounds = array<i64: 1, 1>, scalar_prefetch = 0 : i64, scratch_operands = 0 : i64, tpu.core_type = #tpu.core_type<tc>, window_params = [{transform_indices = @transform_0, window_bounds = array<i64: 16, 128>}, {transform_indices = @transform_1, window_bounds = array<i64: 8, 128>}]} {
    %c0_i32 = arith.constant 0 : i32
    %0 = arith.cmpi eq, %arg1, %c0_i32 : i32
    %1 = arith.extui %0 : i1 to i32
    %c0_i32_0 = arith.constant 0 : i32
    %2 = arith.cmpi ne, %1, %c0_i32_0 : i32
    scf.if %2 {
      %cst_7 = arith.constant 0.000000e+00 : f32
      %15 = vector.broadcast %cst_7 : f32 to vector<8x128xf32>
      %c0_8 = arith.constant 0 : index
      %c0_9 = arith.constant 0 : index
      %16 = vector.load %arg3[%c0_8, %c0_9] : memref<8x128xf32, #tpu.memory_space<vmem>>, vector<8x128xf32>
      tpu.vector_store %arg3[%c0_8, %c0_9], %15 {strides = array<i32>} : memref<8x128xf32, #tpu.memory_space<vmem>>, vector<8x128xf32>,
    } else {
    }
    %cst = arith.constant 0.000000e+00 : f32
    %3 = vector.broadcast %cst : f32 to vector<8x128xf32>
    %c0_i32_1 = arith.constant 0 : i32
    %c16_i32 = arith.constant 16 : i32
    %4 = arith.muli %c0_i32_1, %c16_i32 : i32
    %5 = tpu.assume_multiple %4, 16 : i32
    %6 = arith.index_cast %5 : i32 to index
    %c0 = arith.constant 0 : index
    %7 = vector.load %arg2[%6, %c0] : memref<16x128xf32, #tpu.memory_space<vmem>>, vector<16x128xf32>
    %8 = arith.mulf %7, %7 : vector<16x128xf32>
    %9 = vector.shape_cast %8 : vector<16x128xf32> to vector<2x8x128xf32>
    %cst_2 = arith.constant dense<0.000000e+00> : vector<8x128xf32>
    %10 = vector.multi_reduction <add>, %9, %cst_2 [0] : vector<2x8x128xf32> to vector<8x128xf32>
    %11 = arith.addf %3, %10 : vector<8x128xf32>
    %c1_i32 = arith.constant 1 : i32
    %c0_3 = arith.constant 0 : index
    %c0_4 = arith.constant 0 : index
    %12 = vector.load %arg3[%c0_3, %c0_4] : memref<8x128xf32, #tpu.memory_space<vmem>>, vector<8x128xf32>
    %13 = arith.addf %12, %11 : vector<8x128xf32>
    %c0_5 = arith.constant 0 : index
    %c0_6 = arith.constant 0 : index
    %14 = vector.load %arg3[%c0_5, %c0_6] : memref<8x128xf32, #tpu.memory_space<vmem>>, vector<8x128xf32>
    tpu.vector_store %arg3[%c0_5, %c0_6], %13 {strides = array<i32>} : memref<8x128xf32, #tpu.memory_space<vmem>>, vector<8x128xf32>,
    return
  }
  func.func @transform_0(%arg0: i32, %arg1: i32) -> (i32, i32) {
    %c1_i32 = arith.constant 1 : i32
    %0 = arith.muli %arg0, %c1_i32 : i32
    %1 = arith.addi %0, %arg1 : i32
    %c0_i32 = arith.constant 0 : i32
    %2 = arith.minsi %1, %c0_i32 : i32
    %c0_i32_0 = arith.constant 0 : i32
    %c0_i32_1 = arith.constant 0 : i32
    return %2, %c0_i32_0 : i32, i32
  }
  func.func @transform_1(%arg0: i32, %arg1: i32) -> (i32, i32) {
    %c0_i32 = arith.constant 0 : i32
    %c0_i32_0 = arith.constant 0 : i32
    return %arg0, %c0_i32 : i32, i32
  }
}

</mosaic_0001>

<llo_original>
// kernel: tpu_custom_call.1
$region0: #{tpu_custom_call.1}
  #allocation0 [shape = 'u32[]', space=smem, size = 0x4, offset = 0x4, fixed_abs, tag = 'smem constant byte address 0x4 - core index']
  #allocation1 [shape = 'u32[144,128]{1,0:T(1,128)}', space=vmem, size = 0x12000, scoped, tag = 'internal scratch']
  %s0 = inlined_call_operand.hbm [shape: f32[16,128], index: 0, kind: input, shape index: {}]
  %s1 = inlined_call_operand.hbm [shape: f32[8,128], index: 1, kind: output, shape index: {}]
  %s2 = sld [smem:[#allocation0]]
  $region22: #{tpu_custom_call.1} parent=0
    _
  %s4 = ssub.s32 1, %s2
  %s5 = scalar_select 0, %s4, %s2
  $region1: #{tpu_custom_call.1} parent=0
    #allocation2 [shape = 'u8[8192]{0}', space=vmem, size = 0x2000, scoped, tag = 'input window, operand 0, single buffered']
    #allocation3 [shape = 's32[1]{0}', space=sflag, size = 0x4, scoped, tag = 'scoped memory for tpu_custom_call.1']
    #allocation4 [shape = 's32[1]{0}', space=sflag, size = 0x4, scoped, tag = 'scoped memory for tpu_custom_call.1']
    #allocation5 [shape = 'u8[4096]{0}', space=vmem, size = 0x1000, scoped, tag = 'output window, operand 0, single buffered']
    %6 = vsyncpa [#allocation3], 0
    %7 = vsyncpa [#allocation4], 0
    // Predicated region
    $region2: #{tpu_custom_call.1} parent=1 // pred_check
      _
    $region3: #{tpu_custom_call.1} parent=1 // pred_check_branch
      %9 = sbr.rel (0) target = $region5
    $region4: #{tpu_custom_call.1} parent=1 // pred_region
      %s10 = sadd.s32 0, 0
      %p11 = scmp.lt.s32.totalorder %s10, 0
      %s12 = scalar_select %p11, %s10, 0
      %s13 = smul.u32 2, %s12
      %s15 = ssub.s32 256, 256
      %16 = vsyncadd [#allocation3], %s15
      %s17 = smul.addr %s13, 128
      %s18 = scalar_lea.hbm %s0, %s17
      %s19 = sshll.u32 [#allocation2], 4
      %s20 = int_to_ptr.vmem [resolvable:$true] %s19
      %25 = dma.hbm_to_vmem [thread:$0]  %s18, 256, %s20, [#allocation3], 128, 128, 8
    $region5: #{tpu_custom_call.1} parent=1 // pred_fallthru
      _
    // Predicated region
    $region6: #{tpu_custom_call.1} parent=1 // pred_check
      _
    $region7: #{tpu_custom_call.1} parent=1 // pred_check_branch
      %27 = sbr.rel (0) target = $region9
    $region8: #{tpu_custom_call.1} parent=1 // pred_region
      %28 = dma.done [#allocation3], 256
    $region9: #{tpu_custom_call.1} parent=1 // pred_fallthru
      _
    %s29 = sadd.s32 0, 0
    %p30 = scmp.lt.s32.totalorder %s29, 0
    %s31 = scalar_select %p30, %s29, 0
    %s32 = smul.u32 2, %s31
    %p33 = scmp.eq.s32.totalorder 0, 0
    // Predicated region
    $region10: #{tpu_custom_call.1} parent=1 // pred_check
      %p34 = pneg %p33
    $region11: #{tpu_custom_call.1} parent=1 // pred_check_branch
      %36 = sbr.rel (%p34) target = $region13
    $region12: #{tpu_custom_call.1} parent=1 // pred_region
      %37 = vst [vmem:[#allocation5] sm:$0xff] 0.0
    $region13: #{tpu_custom_call.1} parent=1 // pred_fallthru
      _
    %v38 = vld [vmem:[#allocation2] sm:$0xff]
    %v39 = vld [vmem:[#allocation2 + $0x8] sm:$0xff]
    %v40 = vmul.f32 %v38, %v38
    %v41 = vmul.f32 %v39, %v39
    %v42 = vadd.f32 %v40, %v41
    %v43 = vadd.f32 %v42, 0.0
    %v44 = vld [vmem:[#allocation5] sm:$0xff]
    %v45 = vadd.f32 %v44, %v43
    %46 = vst [vmem:[#allocation5] sm:$0xff] %v45
    // Predicated region
    $region14: #{tpu_custom_call.1} parent=1 // pred_check
      _
    $region15: #{tpu_custom_call.1} parent=1 // pred_check_branch
      %48 = sbr.rel (0) target = $region17
    $region16: #{tpu_custom_call.1} parent=1 // pred_region
      %s50 = ssub.s32 128, 128
      %51 = vsyncadd [#allocation4], %s50
      %s53 = sshll.u32 [#allocation5], 4
      %s54 = int_to_ptr.vmem [resolvable:$true] %s53
      %56 = dma.vmem_to_hbm [thread:$0]  %s54, 128, %s1, [#allocation4]
    $region17: #{tpu_custom_call.1} parent=1 // pred_fallthru
      _
    // Predicated region
    $region18: #{tpu_custom_call.1} parent=1 // pred_check
      _
    $region19: #{tpu_custom_call.1} parent=1 // pred_check_branch
      %58 = sbr.rel (0) target = $region21
    $region20: #{tpu_custom_call.1} parent=1 // pred_region
      %59 = dma.done [#allocation4], 128
    $region21: #{tpu_custom_call.1} parent=1 // pred_fallthru
      _
    %60 = vsyncpa [#allocation3], 1
    %61 = vsyncpa [#allocation4], 1

</llo_original>
